<compile_context>
chip_gen: v5e
topology: v5e:2x2
jax: 0.10.0
libtpu: 0.0.40
codegen_flags: <defaults>
</compile_context>

<pallas_src>
import functools

import jax
import jax.numpy as jnp
from jax.experimental import pallas as pl
from jax.experimental.pallas import tpu as pltpu

LANE = 128
TM_TARGET = 8192                    # target pixels (lanes) per grid step
MAX_LOGITS_BLOCK_BYTES = 2 << 20    # per-step logits DMA block cap (shrinks TILE for big C)


def _fold_to_lane_width(a, lane=LANE):
    """Pairwise tree-sum of vreg-aligned 128-lane column slices (pure VPU adds, no XLU)."""
    cols = a.shape[-1]
    parts = [a[:, g * lane:(g + 1) * lane] for g in range(cols // lane)]
    while len(parts) > 1:
        nxt = [parts[i] + parts[i + 1] for i in range(0, len(parts) - 1, 2)]
        if len(parts) % 2:
            nxt.append(parts[-1])
        parts = nxt
    return parts[0]


# ---------------------------------------------------------------------------
# Fused kernel: log-softmax NLL + per-class (histogram) accumulation
# ---------------------------------------------------------------------------
def _wce_fused_kernel(x_ref, t_ref, s_ref, cnt_ref, *, hw_total):
    p = pl.program_id(1)            # parallel pixel-split (feeds v7x's 2nd TC)
    j = pl.program_id(2)            # pixel-chunk reduction axis (innermost)
    n_inner = pl.num_programs(2)

    @pl.when(j == 0)
    def _():
        s_ref[...] = jnp.zeros_like(s_ref)
        cnt_ref[...] = jnp.zeros_like(cnt_ref)

    x = x_ref[...].astype(jnp.float32)   # (C, TILE) logits (f32 LSE path)
    t = t_ref[...]                       # (1, TILE) int32 labels
    C, tile = x.shape

    # Global pixel-chunk index.  For overrun chunks of an uneven P-split the
    # index_map clamps the block read; `valid` below zeroes their contribution.
    cj = p * n_inner + j
    col = jax.lax.broadcasted_iota(jnp.int32, (1, tile), 1) + cj * tile
    valid = col < hw_total               # masks partial-block tail lanes / overrun chunks

    # log-sum-exp over the class (sublane) axis
    m = jnp.max(x, axis=0, keepdims=True)                              # (1, TILE)
    lse = jnp.log(jnp.sum(jnp.exp(x - m), axis=0, keepdims=True)) + m  # (1, TILE)

    # one-hot gather of the target-class logit (invalid lanes masked out)
    cls = jax.lax.broadcasted_iota(jnp.int32, (C, tile), 0)
    sel = (cls == t) & valid                                           # (C, TILE)
    x_y = jnp.sum(jnp.where(sel, x, 0.0), axis=0, keepdims=True)       # (1, TILE)
    nll = jnp.where(valid, lse - x_y, 0.0)  # also blocks Inf/NaN from garbage tail lanes

    sel_f = sel.astype(jnp.float32)
    # Fold TILE lanes -> 128 BEFORE touching the resident accumulators, so the
    # per-step accumulator RMW is a single (C, 128) load+store per output.
    s_ref[...] += _fold_to_lane_width(sel_f * nll)    # per-class partial NLL sums
    cnt_ref[...] += _fold_to_lane_width(sel_f)        # per-class partial counts


# ---------------------------------------------------------------------------
# Representative weight_func: inverse class frequency over the batch,
# expressed on the per-class pixel counts computed by the fused kernel pass.
# ---------------------------------------------------------------------------
def inverse_freq_weight_func(class_counts, num_classes):
    total = jnp.sum(class_counts)
    return total / (num_classes * jnp.maximum(class_counts, 1.0))
# TODO(synk): a weight_func needing the raw target tensor (beyond class
# frequencies) would require an extra pass over the targets outside this kernel.


# ---------------------------------------------------------------------------
# Wrapper: layout plumbing only (no transpose, no pad)
# ---------------------------------------------------------------------------
def weighted_ce_loss(logits_nchw, target_n1hw,
                     weight_func=inverse_freq_weight_func,
                     tm_target=TM_TARGET):
    N, C, H, W = logits_nchw.shape
    HW = H * W

    # Free, contiguous reshapes: keep NCHW memory layout and native dtype.
    x = logits_nchw.reshape(N, C, HW)                     # (N, C, HW)
    t = target_n1hw.reshape(N, 1, HW).astype(jnp.int32)   # (N, 1, HW) == target[:, 0]

    itemsize = jnp.dtype(logits_nchw.dtype).itemsize
    lane_hw = pl.cdiv(HW, LANE) * LANE
    tile_cap = max(LANE, (MAX_LOGITS_BLOCK_BYTES // max(C * itemsize, 1)) // LANE * LANE)
    TILE = int(min(tm_target, tile_cap, lane_hw))         # multiple of 128

    # No wrapper pad: partial trailing block handled by the in-kernel mask.
    n_chunks = pl.cdiv(HW, TILE)
    # Guarantee >=2 blocks on a parallel axis (v7x has 2 TCs; harmless elsewhere).
    P = 2 if n_chunks >= 2 else 1
    n_inner = pl.cdiv(n_chunks, P)

    # VMEM request: double-buffered logits/target blocks + f32 intermediates +
    # tiny (C,128) accumulators; capped well below physical capacity.
    vmem_est = (2 * C * TILE * itemsize      # double-buffered logits block
                + 2 * TILE * 4               # double-buffered targets block
                + 6 * C * TILE * 4           # f32 intermediates / spill headroom
                + 4 * C * LANE * 4)          # two f32 accumulators (double-buffered)
    try:
        vmem_cap = int(pltpu.get_tpu_info().vmem_capacity_bytes)
    except Exception:
        vmem_cap = 64 << 20                  # conservative (v7x per-TC) fallback
    vmem_limit = int(min(max(2 * vmem_est + (4 << 20), 32 << 20),
                         (vmem_cap * 85) // 100))

    def in_map(n, p, j):
        # Clamp so the overrun chunks of an uneven P-split stay in bounds;
        # the kernel's `valid` mask zeroes their contribution.
        return (n, 0, jnp.minimum(p * n_inner + j, n_chunks - 1))

    def out_map(n, p, j):
        return (n, p, 0, 0)

    s_part, cnt_part = pl.pallas_call(
        functools.partial(_wce_fused_kernel, hw_total=HW),
        out_shape=(
            jax.ShapeDtypeStruct((N, P, C, LANE), jnp.float32),
            jax.ShapeDtypeStruct((N, P, C, LANE), jnp.float32),
        ),
        grid=(N, P, n_inner),
        in_specs=[
            pl.BlockSpec((None, C, TILE), in_map),   # logits
            pl.BlockSpec((None, 1, TILE), in_map),   # targets
        ],
        out_specs=(
            pl.BlockSpec((None, None, C, LANE), out_map),  # per-class NLL partials
            pl.BlockSpec((None, None, C, LANE), out_map),  # per-class count partials
        ),
        compiler_params=pltpu.CompilerParams(
            dimension_semantics=("parallel", "parallel", "arbitrary"),
            vmem_limit_bytes=vmem_limit,
        ),
    )(x, t)

    # Tiny final reductions / weighting in plain JAX.
    S_c = jnp.sum(s_part, axis=(0, 1, 3))        # (C,) sum of NLL per class
    count_c = jnp.sum(cnt_part, axis=(0, 1, 3))  # (C,) pixels per class
    w = weight_func(count_c, C).astype(jnp.float32)
    return jnp.dot(w, S_c) / jnp.dot(w, count_c)


# ---------------------------------------------------------------------------
# Pure-JAX reference (for correctness check)
# ---------------------------------------------------------------------------
def _ref_loss(logits, target_n1hw):
    N, C, H, W = logits.shape
    t = target_n1hw.reshape(N, H, W).astype(jnp.int32)
    counts = jnp.sum(jax.nn.one_hot(t.reshape(-1), C, dtype=jnp.float32), axis=0)
    weights = jnp.float32(t.size) / (C * jnp.maximum(counts, 1.0))
    logp = jax.nn.log_softmax(logits.astype(jnp.float32), axis=1)
    nll = -jnp.take_along_axis(logp, t[:, None, :, :], axis=1)[:, 0]
    w_y = weights[t]
    return jnp.sum(w_y * nll) / jnp.sum(w_y)


if __name__ == "__main__":
    key = jax.random.PRNGKey(0)
    k1, k2, k3, k4, k5, k6 = jax.random.split(key, 6)

    # A) baseline small case
    N, C, H, W = 2, 4, 16, 16
    logits = jax.random.normal(k1, (N, C, H, W), dtype=jnp.float32)
    target = jax.random.randint(k2, (N, 1, H, W), 0, C, dtype=jnp.int32)
    loss = jax.block_until_ready(weighted_ce_loss(logits, target))
    ref = jax.block_until_ready(_ref_loss(logits, target))
    assert jnp.allclose(loss, ref, rtol=1e-5, atol=1e-5), (loss, ref)

    # B) partial trailing block (HW not a multiple of 128), C not a multiple of 8
    logits2 = jax.random.normal(k3, (1, 5, 12, 12), dtype=jnp.float32)
    target2 = jax.random.randint(k4, (1, 1, 12, 12), 0, 5, dtype=jnp.int32)
    loss2 = jax.block_until_ready(weighted_ce_loss(logits2, target2))
    ref2 = jax.block_until_ready(_ref_loss(logits2, target2))
    assert jnp.allclose(loss2, ref2, rtol=1e-5, atol=1e-5), (loss2, ref2)

    # C) multi-chunk reduction + P=2 parallel split with an overrun (clamped) chunk
    logits3 = jax.random.normal(k5, (2, 4, 16, 24), dtype=jnp.float32)
    target3 = jax.random.randint(k6, (2, 1, 16, 24), 0, 4, dtype=jnp.int32)
    loss3 = jax.block_until_ready(weighted_ce_loss(logits3, target3, tm_target=128))
    ref3 = jax.block_until_ready(_ref_loss(logits3, target3))
    assert jnp.allclose(loss3, ref3, rtol=1e-5, atol=1e-5), (loss3, ref3)

    print("KERNEL_OK")
</pallas_src>

<mosaic_0001>
module attributes {stable_mosaic.version = 11 : i64} {
  func.func @_wce_fused_kernel(%arg0: i32, %arg1: i32, %arg2: i32, %arg3: memref<1x4x256xf32, #tpu.memory_space<vmem>>, %arg4: memref<1x1x256xi32, #tpu.memory_space<vmem>>, %arg5: memref<1x1x4x128xf32, #tpu.memory_space<vmem>>, %arg6: memref<1x1x4x128xf32, #tpu.memory_space<vmem>>) attributes {dimension_semantics = [#tpu.dimension_semantics<parallel>, #tpu.dimension_semantics<parallel>, #tpu.dimension_semantics<arbitrary>], iteration_bounds = array<i64: 2, 1, 1>, scalar_prefetch = 0 : i64, scratch_operands = 0 : i64, tpu.core_type = #tpu.core_type<tc>, window_params = [{transform_indices = @transform_0, window_bounds = array<i64: 1, 4, 256>}, {transform_indices = @transform_1, window_bounds = array<i64: 1, 1, 256>}, {transform_indices = @transform_2, window_bounds = array<i64: 1, 1, 4, 128>}, {transform_indices = @transform_3, window_bounds = array<i64: 1, 1, 4, 128>}]} {
    %c0_i32 = arith.constant 0 : i32
    %0 = arith.cmpi eq, %arg2, %c0_i32 : i32
    %1 = arith.extui %0 : i1 to i32
    %c0_i32_0 = arith.constant 0 : i32
    %2 = arith.cmpi ne, %1, %c0_i32_0 : i32
    scf.if %2 {
      %cst_27 = arith.constant 0.000000e+00 : f32
      %58 = vector.broadcast %cst_27 : f32 to vector<4x128xf32>
      %c0_28 = arith.constant 0 : index
      %c0_29 = arith.constant 0 : index
      %c0_30 = arith.constant 0 : index
      %c0_31 = arith.constant 0 : index
      %59 = vector.load %arg5[%c0_28, %c0_29, %c0_30, %c0_31] : memref<1x1x4x128xf32, #tpu.memory_space<vmem>>, vector<1x1x4x128xf32>
      %60 = vector.shape_cast %59 : vector<1x1x4x128xf32> to vector<4x128xf32>
      %61 = vector.shape_cast %58 : vector<4x128xf32> to vector<1x1x4x128xf32>
      tpu.vector_store %arg5[%c0_28, %c0_29, %c0_30, %c0_31], %61 {strides = array<i32>} : memref<1x1x4x128xf32, #tpu.memory_space<vmem>>, vector<1x1x4x128xf32>,
      %cst_32 = arith.constant 0.000000e+00 : f32
      %62 = vector.broadcast %cst_32 : f32 to vector<4x128xf32>
      %c0_33 = arith.constant 0 : index
      %c0_34 = arith.constant 0 : index
      %c0_35 = arith.constant 0 : index
      %c0_36 = arith.constant 0 : index
      %63 = vector.load %arg6[%c0_33, %c0_34, %c0_35, %c0_36] : memref<1x1x4x128xf32, #tpu.memory_space<vmem>>, vector<1x1x4x128xf32>
      %64 = vector.shape_cast %63 : vector<1x1x4x128xf32> to vector<4x128xf32>
      %65 = vector.shape_cast %62 : vector<4x128xf32> to vector<1x1x4x128xf32>
      tpu.vector_store %arg6[%c0_33, %c0_34, %c0_35, %c0_36], %65 {strides = array<i32>} : memref<1x1x4x128xf32, #tpu.memory_space<vmem>>, vector<1x1x4x128xf32>,
    } else {
    }
    %c0 = arith.constant 0 : index
    %c0_1 = arith.constant 0 : index
    %c0_2 = arith.constant 0 : index
    %3 = vector.load %arg3[%c0, %c0_1, %c0_2] : memref<1x4x256xf32, #tpu.memory_space<vmem>>, vector<1x4x256xf32>
    %4 = vector.shape_cast %3 : vector<1x4x256xf32> to vector<4x256xf32>
    %c0_3 = arith.constant 0 : index
    %c0_4 = arith.constant 0 : index
    %c0_5 = arith.constant 0 : index
    %5 = vector.load %arg4[%c0_3, %c0_4, %c0_5] : memref<1x1x256xi32, #tpu.memory_space<vmem>>, vector<1x1x256xi32>
    %6 = vector.shape_cast %5 : vector<1x1x256xi32> to vector<1x256xi32>
    %c1_i32 = arith.constant 1 : i32
    %7 = arith.muli %arg1, %c1_i32 : i32
    %8 = arith.addi %7, %arg2 : i32
    %9 = tpu.iota {dimensions = array<i32: 1>} : vector<1x256xi32>
    %c256_i32 = arith.constant 256 : i32
    %10 = arith.muli %8, %c256_i32 : i32
    %11 = vector.broadcast %10 : i32 to vector<1x256xi32>
    %12 = arith.addi %9, %11 : vector<1x256xi32>
    %c256_i32_6 = arith.constant 256 : i32
    %13 = vector.broadcast %c256_i32_6 : i32 to vector<1x256xi32>
    %14 = arith.cmpi slt, %12, %13 : vector<1x256xi32>
    %cst = arith.constant dense<0xFF800000> : vector<256xf32>
    %15 = vector.multi_reduction <maximumf>, %4, %cst [0] : vector<4x256xf32> to vector<256xf32>
    %16 = vector.shape_cast %15 : vector<256xf32> to vector<1x256xf32>
    %17 = vector.broadcast %16 : vector<1x256xf32> to vector<4x256xf32>
    %18 = arith.subf %4, %17 : vector<4x256xf32>
    %19 = math.exp %18 : vector<4x256xf32>
    %cst_7 = arith.constant dense<0.000000e+00> : vector<256xf32>
    %20 = vector.multi_reduction <add>, %19, %cst_7 [0] : vector<4x256xf32> to vector<256xf32>
    %21 = vector.shape_cast %20 : vector<256xf32> to vector<1x256xf32>
    %22 = math.log %21 : vector<1x256xf32>
    %23 = arith.addf %22, %16 : vector<1x256xf32>
    %24 = tpu.iota {dimensions = array<i32: 0>} : vector<4x256xi32>
    %25 = vector.broadcast %6 : vector<1x256xi32> to vector<4x256xi32>
    %26 = arith.cmpi eq, %24, %25 : vector<4x256xi32>
    %27 = vector.broadcast %14 : vector<1x256xi1> to vector<4x256xi1>
    %28 = arith.andi %26, %27 : vector<4x256xi1>
    %cst_8 = arith.constant 0.000000e+00 : f32
    %29 = vector.broadcast %cst_8 : f32 to vector<4x256xf32>
    %30 = arith.select %28, %4, %29 : vector<4x256xi1>, vector<4x256xf32>
    %cst_9 = arith.constant dense<0.000000e+00> : vector<256xf32>
    %31 = vector.multi_reduction <add>, %30, %cst_9 [0] : vector<4x256xf32> to vector<256xf32>
    %32 = vector.shape_cast %31 : vector<256xf32> to vector<1x256xf32>
    %33 = arith.subf %23, %32 : vector<1x256xf32>
    %cst_10 = arith.constant 0.000000e+00 : f32
    %34 = vector.broadcast %cst_10 : f32 to vector<1x256xf32>
    %35 = arith.select %14, %33, %34 : vector<1x256xi1>, vector<1x256xf32>
    %36 = arith.extui %28 : vector<4x256xi1> to vector<4x256xi32>
    %37 = arith.sitofp %36 : vector<4x256xi32> to vector<4x256xf32>
    %c0_11 = arith.constant 0 : index
    %c0_12 = arith.constant 0 : index
    %c0_13 = arith.constant 0 : index
    %c0_14 = arith.constant 0 : index
    %38 = vector.load %arg5[%c0_11, %c0_12, %c0_13, %c0_14] : memref<1x1x4x128xf32, #tpu.memory_space<vmem>>, vector<1x1x4x128xf32>
    %39 = vector.shape_cast %38 : vector<1x1x4x128xf32> to vector<4x128xf32>
    %40 = vector.broadcast %35 : vector<1x256xf32> to vector<4x256xf32>
    %41 = arith.mulf %37, %40 : vector<4x256xf32>
    %42 = vector.extract_strided_slice %41 {offsets = [0, 0], sizes = [4, 128], strides = [1, 1]} : vector<4x256xf32> to vector<4x128xf32>
    %43 = vector.extract_strided_slice %41 {offsets = [0, 128], sizes = [4, 128], strides = [1, 1]} : vector<4x256xf32> to vector<4x128xf32>
    %44 = arith.addf %42, %43 : vector<4x128xf32>
    %45 = arith.addf %39, %44 : vector<4x128xf32>
    %c0_15 = arith.constant 0 : index
    %c0_16 = arith.constant 0 : index
    %c0_17 = arith.constant 0 : index
    %c0_18 = arith.constant 0 : index
    %46 = vector.load %arg5[%c0_15, %c0_16, %c0_17, %c0_18] : memref<1x1x4x128xf32, #tpu.memory_space<vmem>>, vector<1x1x4x128xf32>
    %47 = vector.shape_cast %46 : vector<1x1x4x128xf32> to vector<4x128xf32>
    %48 = vector.shape_cast %45 : vector<4x128xf32> to vector<1x1x4x128xf32>
    tpu.vector_store %arg5[%c0_15, %c0_16, %c0_17, %c0_18], %48 {strides = array<i32>} : memref<1x1x4x128xf32, #tpu.memory_space<vmem>>, vector<1x1x4x128xf32>,
    %c0_19 = arith.constant 0 : index
    %c0_20 = arith.constant 0 : index
    %c0_21 = arith.constant 0 : index
    %c0_22 = arith.constant 0 : index
    %49 = vector.load %arg6[%c0_19, %c0_20, %c0_21, %c0_22] : memref<1x1x4x128xf32, #tpu.memory_space<vmem>>, vector<1x1x4x128xf32>
    %50 = vector.shape_cast %49 : vector<1x1x4x128xf32> to vector<4x128xf32>
    %51 = vector.extract_strided_slice %37 {offsets = [0, 0], sizes = [4, 128], strides = [1, 1]} : vector<4x256xf32> to vector<4x128xf32>
    %52 = vector.extract_strided_slice %37 {offsets = [0, 128], sizes = [4, 128], strides = [1, 1]} : vector<4x256xf32> to vector<4x128xf32>
    %53 = arith.addf %51, %52 : vector<4x128xf32>
    %54 = arith.addf %50, %53 : vector<4x128xf32>
    %c0_23 = arith.constant 0 : index
    %c0_24 = arith.constant 0 : index
    %c0_25 = arith.constant 0 : index
    %c0_26 = arith.constant 0 : index
    %55 = vector.load %arg6[%c0_23, %c0_24, %c0_25, %c0_26] : memref<1x1x4x128xf32, #tpu.memory_space<vmem>>, vector<1x1x4x128xf32>
    %56 = vector.shape_cast %55 : vector<1x1x4x128xf32> to vector<4x128xf32>
    %57 = vector.shape_cast %54 : vector<4x128xf32> to vector<1x1x4x128xf32>
    tpu.vector_store %arg6[%c0_23, %c0_24, %c0_25, %c0_26], %57 {strides = array<i32>} : memref<1x1x4x128xf32, #tpu.memory_space<vmem>>, vector<1x1x4x128xf32>,
    return
  }
  func.func @transform_0(%arg0: i32, %arg1: i32, %arg2: i32) -> (i32, i32, i32) {
    %c1_i32 = arith.constant 1 : i32
    %0 = arith.muli %arg1, %c1_i32 : i32
    %1 = arith.addi %0, %arg2 : i32
    %c0_i32 = arith.constant 0 : i32
    %2 = arith.minsi %1, %c0_i32 : i32
    %c0_i32_0 = arith.constant 0 : i32
    %c0_i32_1 = arith.constant 0 : i32
    return %arg0, %c0_i32_0, %2 : i32, i32, i32
  }
  func.func @transform_1(%arg0: i32, %arg1: i32, %arg2: i32) -> (i32, i32, i32) {
    %c1_i32 = arith.constant 1 : i32
    %0 = arith.muli %arg1, %c1_i32 : i32
    %1 = arith.addi %0, %arg2 : i32
    %c0_i32 = arith.constant 0 : i32
    %2 = arith.minsi %1, %c0_i32 : i32
    %c0_i32_0 = arith.constant 0 : i32
    %c0_i32_1 = arith.constant 0 : i32
    return %arg0, %c0_i32_0, %2 : i32, i32, i32
  }
  func.func @transform_2(%arg0: i32, %arg1: i32, %arg2: i32) -> (i32, i32, i32, i32) {
    %c0_i32 = arith.constant 0 : i32
    %c0_i32_0 = arith.constant 0 : i32
    %c0_i32_1 = arith.constant 0 : i32
    return %arg0, %arg1, %c0_i32, %c0_i32_0 : i32, i32, i32, i32
  }
  func.func @transform_3(%arg0: i32, %arg1: i32, %arg2: i32) -> (i32, i32, i32, i32) {
    %c0_i32 = arith.constant 0 : i32
    %c0_i32_0 = arith.constant 0 : i32
    %c0_i32_1 = arith.constant 0 : i32
    return %arg0, %arg1, %c0_i32, %c0_i32_0 : i32, i32, i32, i32
  }
}

</mosaic_0001>

<llo_original>
// kernel: tpu_custom_call.1
$region0: #{tpu_custom_call.1}
  #allocation0 [shape = 'u32[]', space=smem, size = 0x4, offset = 0x4, fixed_abs, tag = 'smem constant byte address 0x4 - core index']
  #allocation1 [shape = 'u32[72,128]{1,0:T(1,128)}', space=vmem, size = 0x9000, scoped, tag = 'internal scratch']
  %s0 = inlined_call_operand.hbm [shape: f32[2,4,256], index: 0, kind: input, shape index: {}]
  %s1 = inlined_call_operand.hbm [shape: s32[2,1,256], index: 1, kind: input, shape index: {}]
  %s2 = inlined_call_operand.hbm [shape: f32[2,1,4,128], index: 2, kind: output, shape index: {0}]
  %s3 = inlined_call_operand.hbm [shape: f32[2,1,4,128], index: 3, kind: output, shape index: {1}]
  %4 = xla_tuple %s2, %s3
  %s5 = sld [smem:[#allocation0]]
  $region61: #{tpu_custom_call.1} parent=0
    _
  %s7 = ssub.s32 1, %s5
  %s8 = scalar_select 0, %s7, %s5
  $region1: #{tpu_custom_call.1} parent=0
    #allocation2 [shape = 'u8[8192]{0}', space=vmem, size = 0x2000, scoped, tag = 'input window, operand 0']
    #allocation3 [shape = 's32[2]{0}', space=sflag, size = 0x8, scoped, tag = 'scoped memory for tpu_custom_call.1']
    #allocation4 [shape = 's32[2]{0}', space=sflag, size = 0x8, scoped, tag = 'scoped memory for tpu_custom_call.1']
    #allocation5 [shape = 'u8[2048]{0}', space=vmem, size = 0x800, scoped, tag = 'input window, operand 1']
    #allocation6 [shape = 's32[2]{0}', space=sflag, size = 0x8, scoped, tag = 'scoped memory for tpu_custom_call.1']
    #allocation7 [shape = 'u8[4096]{0}', space=vmem, size = 0x1000, scoped, tag = 'output window, operand 0']
    #allocation8 [shape = 'u8[4096]{0}', space=vmem, size = 0x1000, scoped, tag = 'output window, operand 1']
    #allocation9 [shape = 's32[2]{0}', space=sflag, size = 0x8, scoped, tag = 'scoped memory for tpu_custom_call.1']
    %9 = vsyncpa [#allocation3], 0
    %s10 = scalar_lea.sflag [#allocation3], 1
    %11 = vsyncpa %s10, 0
    %12 = vsyncpa [#allocation6], 0
    %s13 = scalar_lea.sflag [#allocation6], 1
    %14 = vsyncpa %s13, 0
    %15 = vsyncpa [#allocation4], 0
    %s16 = scalar_lea.sflag [#allocation4], 1
    %17 = vsyncpa %s16, 0
    %18 = vsyncpa [#allocation9], 0
    %s19 = scalar_lea.sflag [#allocation9], 1
    %20 = vsyncpa %s19, 0
    loop: start=0, step=1, limit=4
    $region2: #{tpu_custom_call.1} parent=1 // loop_pre_header
      _
    $region3: #{tpu_custom_call.1} parent=1 // loop_header
      %s22 = sphi 0, %s26
      %p23 = scmp.ge.s32.totalorder %s22, 4
      %s29 = sphi 0, %s48
      %s30 = sphi 0, %s44
      %s31 = sphi 0, %s40
      %s32 = sphi 0, %s29
      %s33 = sphi 0, %s30
      %s34 = sphi 0, %s31
      %s35 = sphi 0, %s32
      %s36 = sphi 0, %s33
      %s37 = sphi 0, %s34
      %s59 = sphi 0, %s61
      %s62 = sphi 0, %s59
      %s63 = sphi 0, %s62
      %s79 = sphi 0, %s63
      %s93 = sphi 0, %s95
      %s96 = sphi 0, %s93
      %s97 = sphi 0, %s96
      %s113 = sphi 0, %s97
      %s121 = sphi 0, %s123
      %s124 = sphi 0, %s121
      %s125 = sphi 0, %s124
      %s141 = sphi 0, %s125
      %s149 = sphi 0, %s151
      %s152 = sphi 0, %s149
      %s153 = sphi 0, %s152
      %s169 = sphi 0, %s153
    $region4: #{tpu_custom_call.1} parent=1 // loop_header_branch
      %25 = sbr.rel (%p23) target = $region8
    $region5: #{tpu_custom_call.1} parent=1 // loop_body
      %s27 = ssub.s32 %s22, 1
      %s28 = ssub.s32 %s22, 2
      %s38 = sadd.s32 1, %s31
      %p39 = scmp.ge.s32.totalorder %s38, 1
      %s40 = scalar_select %p39, 0, %s38
      %s41 = sadd.s32 1, %s30
      %s42 = scalar_select %p39, %s41, %s30
      %p43 = scmp.ge.s32.totalorder %s42, 1
      %s44 = scalar_select %p43, 0, %s42
      %s45 = sadd.s32 1, %s29
      %s46 = scalar_select %p43, %s45, %s29
      %p47 = scmp.ge.s32.totalorder %s46, 2
      %s48 = scalar_select %p47, 0, %s46
      %s49 = sadd.s32 %s30, %s31
      %p50 = scmp.lt.s32.totalorder %s49, 0
      %s51 = scalar_select %p50, %s49, 0
      %s52 = sadd.s32 %s44, %s40
      %p53 = scmp.lt.s32.totalorder %s52, 0
      %s54 = scalar_select %p53, %s52, 0
      %s55 = ssub.s32 %s29, %s48
      %s56 = ssub.s32 %s51, %s54
      %s57 = sor.u32 %s55, %s56
      %p58 = scmp.eq.s32.totalorder %s57, 0
      %s60 = sadd.s32 %s59, 1
      %s61 = scalar_select %p58, %s59, %s60
      %p64 = pneg %p58
      %p65 = scmp.eq.s32.totalorder %s22, 1
      %p66 = por %p64, %p65
      %p67 = scmp.ne.s32.totalorder %s59, %s62
      %p68 = scmp.eq.s32.totalorder %s22, 0
      %p69 = por %p67, %p68
      %p70 = scmp.ne.s32.totalorder %s59, %s62
      %p71 = scmp.eq.s32.totalorder %s27, 1
      %p72 = por %p70, %p71
      %p73 = scmp.ne.s32.totalorder %s62, %s63
      %p74 = scmp.eq.s32.totalorder %s27, 0
      %p75 = por %p73, %p74
      %p76 = scmp.ne.s32.totalorder %s62, %s63
      %p77 = scmp.eq.s32.totalorder %s28, 1
      %p78 = por %p76, %p77
      %p80 = scmp.ne.s32.totalorder %s63, %s79
      %p81 = scmp.eq.s32.totalorder %s28, 0
      %p82 = por %p80, %p81
      %s83 = sadd.s32 %s30, %s31
      %p84 = scmp.lt.s32.totalorder %s83, 0
      %s85 = scalar_select %p84, %s83, 0
      %s86 = sadd.s32 %s44, %s40
      %p87 = scmp.lt.s32.totalorder %s86, 0
      %s88 = scalar_select %p87, %s86, 0
      %s89 = ssub.s32 %s29, %s48
      %s90 = ssub.s32 %s85, %s88
      %s91 = sor.u32 %s89, %s90
      %p92 = scmp.eq.s32.totalorder %s91, 0
      %s94 = sadd.s32 %s93, 1
      %s95 = scalar_select %p92, %s93, %s94
      %p98 = pneg %p92
      %p99 = scmp.eq.s32.totalorder %s22, 1
      %p100 = por %p98, %p99
      %p101 = scmp.ne.s32.totalorder %s93, %s96
      %p102 = scmp.eq.s32.totalorder %s22, 0
      %p103 = por %p101, %p102
      %p104 = scmp.ne.s32.totalorder %s93, %s96
      %p105 = scmp.eq.s32.totalorder %s27, 1
      %p106 = por %p104, %p105
      %p107 = scmp.ne.s32.totalorder %s96, %s97
      %p108 = scmp.eq.s32.totalorder %s27, 0
      %p109 = por %p107, %p108
      %p110 = scmp.ne.s32.totalorder %s96, %s97
      %p111 = scmp.eq.s32.totalorder %s28, 1
      %p112 = por %p110, %p111
      %p114 = scmp.ne.s32.totalorder %s97, %s113
      %p115 = scmp.eq.s32.totalorder %s28, 0
      %p116 = por %p114, %p115
      %s117 = ssub.s32 %s29, %s48
      %s118 = ssub.s32 %s30, %s44
      %s119 = sor.u32 %s117, %s118
      %p120 = scmp.eq.s32.totalorder %s119, 0
      %s122 = sadd.s32 %s121, 1
      %s123 = scalar_select %p120, %s121, %s122
      %p126 = pneg %p120
      %p127 = scmp.eq.s32.totalorder %s22, 1
      %p128 = por %p126, %p127
      %p129 = scmp.ne.s32.totalorder %s121, %s124
      %p130 = scmp.eq.s32.totalorder %s22, 0
      %p131 = por %p129, %p130
      %p132 = scmp.ne.s32.totalorder %s121, %s124
      %p133 = scmp.eq.s32.totalorder %s27, 1
      %p134 = por %p132, %p133
      %p135 = scmp.ne.s32.totalorder %s124, %s125
      %p136 = scmp.eq.s32.totalorder %s27, 0
      %p137 = por %p135, %p136
      %p138 = scmp.ne.s32.totalorder %s124, %s125
      %p139 = scmp.eq.s32.totalorder %s28, 1
      %p140 = por %p138, %p139
      %p142 = scmp.ne.s32.totalorder %s125, %s141
      %p143 = scmp.eq.s32.totalorder %s28, 0
      %p144 = por %p142, %p143
      %s145 = ssub.s32 %s29, %s48
      %s146 = ssub.s32 %s30, %s44
      %s147 = sor.u32 %s145, %s146
      %p148 = scmp.eq.s32.totalorder %s147, 0
      %s150 = sadd.s32 %s149, 1
      %s151 = scalar_select %p148, %s149, %s150
      %p154 = pneg %p148
      %p155 = scmp.eq.s32.totalorder %s22, 1
      %p156 = por %p154, %p155
      %p157 = scmp.ne.s32.totalorder %s149, %s152
      %p158 = scmp.eq.s32.totalorder %s22, 0
      %p159 = por %p157, %p158
      %p160 = scmp.ne.s32.totalorder %s149, %s152
      %p161 = scmp.eq.s32.totalorder %s27, 1
      %p162 = por %p160, %p161
      %p163 = scmp.ne.s32.totalorder %s152, %s153
      %p164 = scmp.eq.s32.totalorder %s27, 0
      %p165 = por %p163, %p164
      %p166 = scmp.ne.s32.totalorder %s152, %s153
      %p167 = scmp.eq.s32.totalorder %s28, 1
      %p168 = por %p166, %p167
      %p170 = scmp.ne.s32.totalorder %s153, %s169
      %p171 = scmp.eq.s32.totalorder %s28, 0
      %p172 = por %p170, %p171
      %p173 = scmp.le.s32.totalorder 1, %s22
      %p174 = scmp.lt.s32.totalorder %s22, 3
      %p175 = pnand %p173, %p174
      %p176 = pneg %p175
      // Predicated region
      $region9: #{tpu_custom_call.1} parent=5 // pred_check
        _
      $region10: #{tpu_custom_call.1} parent=5 // pred_check_branch
        %178 = sbr.rel (%p175) target = $region12
      $region11: #{tpu_custom_call.1} parent=5 // pred_region
        %s179 = ssub.s32 %s22, 1
      $region12: #{tpu_custom_call.1} parent=5 // pred_fallthru
        _
      %p180 = scmp.lt.s32.totalorder %s22, 2
      // Predicated region
      $region13: #{tpu_custom_call.1} parent=5 // pred_check
        %p181 = pneg %p180
      $region14: #{tpu_custom_call.1} parent=5 // pred_check_branch
        %183 = sbr.rel (%p181) target = $region16
      $region15: #{tpu_custom_call.1} parent=5 // pred_region
        // Predicated region
        $region17: #{tpu_custom_call.1} parent=15 // pred_check
          %p184 = pneg %p69
        $region18: #{tpu_custom_call.1} parent=15 // pred_check_branch
          %186 = sbr.rel (%p184) target = $region20
        $region19: #{tpu_custom_call.1} parent=15 // pred_region
          %s187 = sand.u32 %s59, 1
          %s188 = scalar_lea.sflag [#allocation3], %s187
          %s189 = sand.u32 %s59, 1
          %s190 = smul.addr %s189, 8
          %s191 = scalar_lea.vmem [#allocation2], %s190
          %s192 = sadd.s32 %s30, %s31
          %p193 = scmp.lt.s32.totalorder %s192, 0
          %s194 = scalar_select %p193, %s192, 0
          %s195 = smul.u32 2, %s194
          %197 = vsyncadd %s188, 0
          %s198 = smul.addr %s29, 2
          %s199 = sadd.s32 %s195, %s198
          %s200 = smul.addr %s199, 4
          %s201 = scalar_lea.hbm %s0, %s200
          %s203 = sshll.u32 %s201, 4
          %s204 = int_to_ptr.hbm [resolvable:$true] %s203
          %s205 = sshll.u32 %s191, 4
          %s206 = int_to_ptr.vmem [resolvable:$true] %s205
          %208 = dma.hbm_to_vmem [thread:$0]  %s204, 128, %s206, %s188
        $region20: #{tpu_custom_call.1} parent=15 // pred_fallthru
          _
        // Predicated region
        $region21: #{tpu_custom_call.1} parent=15 // pred_check
          %p209 = pneg %p103
        $region22: #{tpu_custom_call.1} parent=15 // pred_check_branch
          %211 = sbr.rel (%p209) target = $region24
        $region23: #{tpu_custom_call.1} parent=15 // pred_region
          %s212 = sand.u32 %s93, 1
          %s213 = scalar_lea.sflag [#allocation6], %s212
          %s214 = sand.u32 %s93, 1
          %s215 = smul.addr %s214, 2
          %s216 = scalar_lea.vmem [#allocation5], %s215
          %s217 = sadd.s32 %s30, %s31
          %p218 = scmp.lt.s32.totalorder %s217, 0
          %s219 = scalar_select %p218, %s217, 0
          %s220 = smul.u32 2, %s219
          %222 = vsyncadd %s213, 0
          %s223 = smul.addr %s29, 2
          %s224 = sadd.s32 %s220, %s223
          %s225 = scalar_lea.hbm %s1, %s224
          %s227 = sshll.u32 %s225, 4
          %s228 = int_to_ptr.hbm [resolvable:$true] %s227
          %s229 = sshll.u32 %s216, 4
          %s230 = int_to_ptr.vmem [resolvable:$true] %s229
          %232 = dma.hbm_to_vmem [thread:$0]  %s228, 32, %s230, %s213
        $region24: #{tpu_custom_call.1} parent=15 // pred_fallthru
          _
      $region16: #{tpu_custom_call.1} parent=5 // pred_fallthru
        _
      %p233 = scmp.le.s32.totalorder 1, %s22
      %p234 = scmp.lt.s32.totalorder %s22, 3
      %p235 = pnand %p233, %p234
      %p236 = pneg %p235
      // Predicated region
      $region25: #{tpu_custom_call.1} parent=5 // pred_check
        _
      $region26: #{tpu_custom_call.1} parent=5 // pred_check_branch
        %238 = sbr.rel (%p235) target = $region28
      $region27: #{tpu_custom_call.1} parent=5 // pred_region
        %s239 = ssub.s32 %s22, 1
        %s240 = sand.u32 %s62, 1
        %s241 = scalar_lea.sflag [#allocation3], %s240
        %s242 = sand.u32 %s62, 1
        %s243 = smul.addr %s242, 8
        %s244 = scalar_lea.vmem [#allocation2], %s243
        // Predicated region
        $region29: #{tpu_custom_call.1} parent=27 // pred_check
          %p245 = pneg %p75
        $region30: #{tpu_custom_call.1} parent=27 // pred_check_branch
          %247 = sbr.rel (%p245) target = $region32
        $region31: #{tpu_custom_call.1} parent=27 // pred_region
          %249 = dma.done %s241, 128
        $region32: #{tpu_custom_call.1} parent=27 // pred_fallthru
          _
        %s250 = sand.u32 %s96, 1
        %s251 = scalar_lea.sflag [#allocation6], %s250
        %s252 = sand.u32 %s96, 1
        %s253 = smul.addr %s252, 2
        %s254 = scalar_lea.vmem [#allocation5], %s253
        // Predicated region
        $region33: #{tpu_custom_call.1} parent=27 // pred_check
          %p255 = pneg %p109
        $region34: #{tpu_custom_call.1} parent=27 // pred_check_branch
          %257 = sbr.rel (%p255) target = $region36
        $region35: #{tpu_custom_call.1} parent=27 // pred_region
          %259 = dma.done %s251, 32
        $region36: #{tpu_custom_call.1} parent=27 // pred_fallthru
          _
        %s260 = sand.u32 %s62, 1
        %s261 = scalar_lea.sflag [#allocation3], %s260
        %s262 = sand.u32 %s62, 1
        %s263 = smul.addr %s262, 8
        %s264 = scalar_lea.vmem [#allocation2], %s263
        %p265 = pneg %p75
        %p266 = pneg %p72
        %s267 = sand.u32 %s96, 1
        %s268 = scalar_lea.sflag [#allocation6], %s267
        %s269 = sand.u32 %s96, 1
        %s270 = smul.addr %s269, 2
        %s271 = scalar_lea.vmem [#allocation5], %s270
        %p272 = pneg %p109
        %p273 = pneg %p106
        %p274 = pneg %p137
        %p275 = pneg %p134
        %s276 = sand.u32 %s124, 1
        %s277 = scalar_lea.sflag [#allocation4], %s276
        %s278 = sand.u32 %s124, 1
        %s279 = smul.addr %s278, 4
        %s280 = scalar_lea.vmem [#allocation7], %s279
        %p281 = pneg %p165
        %p282 = pneg %p162
        %s283 = sand.u32 %s152, 1
        %s284 = scalar_lea.sflag [#allocation9], %s283
        %s285 = sand.u32 %s152, 1
        %s286 = smul.addr %s285, 4
        %s287 = scalar_lea.vmem [#allocation8], %s286
        %s288 = sadd.s32 %s33, %s34
        %p289 = scmp.lt.s32.totalorder %s288, 0
        %s290 = scalar_select %p289, %s288, 0
        %s291 = smul.u32 2, %s290
        %s292 = sadd.s32 %s33, %s34
        %p293 = scmp.lt.s32.totalorder %s292, 0
        %s294 = scalar_select %p293, %s292, 0
        %s295 = smul.u32 2, %s294
        %p296 = scmp.eq.s32.totalorder %s34, 0
        // Predicated region
        $region37: #{tpu_custom_call.1} parent=27 // pred_check
          %p297 = pneg %p296
        $region38: #{tpu_custom_call.1} parent=27 // pred_check_branch
          %299 = sbr.rel (%p297) target = $region40
        $region39: #{tpu_custom_call.1} parent=27 // pred_region
          %300 = vst [vmem:[%s280] sm:$0xf] 0.0
          %301 = vst [vmem:[%s287] sm:$0xf] 0.0
        $region40: #{tpu_custom_call.1} parent=27 // pred_fallthru
          _
        %v302 = vld [vmem:[%s244] sm:$0xff]
        %v303 = vld [vmem:[%s254] sm:$0x3]
        %s304 = sadd.s32 %s33, %s34
        %v305 = vlaneseq
        %v306 = vand.u32 %v305, 127
        %v307 = vadd.s32 %v306, 128
        %s308 = smul.u32 %s304, 256
        %v309 = vstv %s308
        %v310 = vadd.s32 %v306, %v309
        %v311 = vadd.s32 %v307, %v309
        %vm312 = vcmp.lt.s32.totalorder %v310, 256
        %vm313 = vcmp.lt.s32.totalorder %v311, 256
        %315 = vst [vmem:[#allocation1] ss:$2 sm:$0xff] %v302
        %v316 = vld.sshfl [vmem:[#allocation1] sm:$0xff pattern:$0x75316420]
        %v317 = vld.sshfl [vmem:[#allocation1 + $0x8] sm:$0xff pattern:$0x75316420]
        %vm320 = vcmask 1043456
        %v321 = vsel %vm320, %v316, -inf
        %v322 = vrot.slane %v321, 4
        %v323 = vmax.f32 %v321, %v322
        %v324 = vrot.slane %v323, 2
        %v325 = vmax.f32 %v323, %v324
        %v326 = vrot.slane %v325, 1
        %v327 = vmax.f32 %v325, %v326
        %v328 = vsel %vm320, %v317, -inf
        %v329 = vrot.slane %v328, 4
        %v330 = vmax.f32 %v328, %v329
        %v331 = vrot.slane %v330, 2
        %v332 = vmax.f32 %v330, %v331
        %v333 = vrot.slane %v332, 1
        %v334 = vmax.f32 %v332, %v333
        %v337 = vrot.slane %v334, 4
        %v338 = vsel %vm320, %v327, %v337
        %v340 = vsub.f32 %v302, %v338
        %v341 = vmul.f32 %v340, 1.442695
        %v342 = vpow.pop %v341
        %344 = vst [vmem:[#allocation1] ss:$2 sm:$0xff] %v342
        %v345 = vld.sshfl [vmem:[#allocation1] sm:$0xff pattern:$0x75316420]
        %v346 = vld.sshfl [vmem:[#allocation1 + $0x8] sm:$0xff pattern:$0x75316420]
        %v349 = vsel %vm320, %v345, 0.0
        %v350 = vrot.slane %v349, 4
        %v351 = vadd.f32 %v349, %v350
        %v352 = vrot.slane %v351, 2
        %v353 = vadd.f32 %v351, %v352
        %v354 = vrot.slane %v353, 1
        %v355 = vadd.f32 %v353, %v354
        %v356 = vsel %vm320, %v346, 0.0
        %v357 = vrot.slane %v356, 4
        %v358 = vadd.f32 %v356, %v357
        %v359 = vrot.slane %v358, 2
        %v360 = vadd.f32 %v358, %v359
        %v361 = vrot.slane %v360, 1
        %v362 = vadd.f32 %v360, %v361
        %v363 = vlog2.pop %v355
        %v364 = vmul.f32 %v363, 0.6931472
        %v365 = vlog2.pop %v362
        %v366 = vmul.f32 %v365, 0.6931472
        %v367 = vadd.f32 %v364, %v327
        %v368 = vadd.f32 %v366, %v334
        %v369 = vlaneseq
        %v370 = vshrl.u32 %v369, 7
        %v371 = vperm.slane %v303, 0
        %v372 = vperm.slane %v303, 1
        %vm373 = vcmp.eq.s32.totalorder %v370, %v371
        %vm374 = vcmp.eq.s32.totalorder %v370, %v372
        %v375 = vsel %vm312, 1, 0
        %v376 = vsel %vm313, 1, 0
        %vm377 = vcmp.eq.s32.totalorder %v375, 1
        %vm378 = vcmp.eq.s32.totalorder %v376, 1
        %vm379 = vmand %vm373, %vm377
        %vm380 = vmand %vm374, %vm378
        %381 = vst [vmem:[#allocation1] ss:$2 sm:$0xff] %v302
        %v382 = vld.sshfl [vmem:[#allocation1] sm:$0xff pattern:$0x75316420]
        %v383 = vld.sshfl [vmem:[#allocation1 + $0x8] sm:$0xff pattern:$0x75316420]
        %v386 = vsel %vm379, %v382, 0.0
        %v387 = vsel %vm380, %v383, 0.0
        %v388 = vsel %vm320, %v386, 0.0
        %v389 = vrot.slane %v388, 4
        %v390 = vadd.f32 %v388, %v389
        %v391 = vrot.slane %v390, 2
        %v392 = vadd.f32 %v390, %v391
        %v393 = vrot.slane %v392, 1
        %v394 = vadd.f32 %v392, %v393
        %v395 = vsel %vm320, %v387, 0.0
        %v396 = vrot.slane %v395, 4
        %v397 = vadd.f32 %v395, %v396
        %v398 = vrot.slane %v397, 2
        %v399 = vadd.f32 %v397, %v398
        %v400 = vrot.slane %v399, 1
        %v401 = vadd.f32 %v399, %v400
        %v402 = vsub.f32 %v367, %v394
        %v403 = vsub.f32 %v368, %v401
        %v404 = vsel %vm312, %v402, 0.0
        %v405 = vsel %vm313, %v403, 0.0
        %v406 = vsel %vm379, 1, 0
        %v407 = vsel %vm380, 1, 0
        %v408 = vcvt.s32.f32 %v406
        %v409 = vcvt.s32.f32 %v407
        %v410 = vld [vmem:[%s280] sm:$0xf]
        %v411 = vmul.f32 %v408, %v404
        %v412 = vmul.f32 %v409, %v405
        %v413 = vadd.f32 %v411, %v412
        %v414 = vadd.f32 %v410, %v413
        %415 = vst [vmem:[%s280] sm:$0xf] %v414
        %v416 = vld [vmem:[%s287] sm:$0xf]
        %v417 = vadd.f32 %v408, %v409
        %v418 = vadd.f32 %v416, %v417
        %419 = vst [vmem:[%s287] sm:$0xf] %v418
        %s420 = sand.u32 %s124, 1
        %s421 = scalar_lea.sflag [#allocation4], %s420
        %s422 = sand.u32 %s124, 1
        %s423 = smul.addr %s422, 4
        %s424 = scalar_lea.vmem [#allocation7], %s423
        %s425 = sand.u32 %s152, 1
        %s426 = scalar_lea.sflag [#allocation9], %s425
        %s427 = sand.u32 %s152, 1
        %s428 = smul.addr %s427, 4
        %s429 = scalar_lea.vmem [#allocation8], %s428
        // Predicated region
        $region41: #{tpu_custom_call.1} parent=27 // pred_check
          %p430 = pneg %p134
        $region42: #{tpu_custom_call.1} parent=27 // pred_check_branch
          %432 = sbr.rel (%p430) target = $region44
        $region43: #{tpu_custom_call.1} parent=27 // pred_region
          %434 = vsyncadd %s421, 0
          %s435 = sadd.s32 %s33, %s32
          %s436 = smul.addr %s435, 4
          %s437 = scalar_lea.hbm %s2, %s436
          %s439 = sshll.u32 %s424, 4
          %s440 = int_to_ptr.vmem [resolvable:$true] %s439
          %s441 = sshll.u32 %s437, 4
          %s442 = int_to_ptr.hbm [resolvable:$true] %s441
          %444 = dma.vmem_to_hbm [thread:$0]  %s440, 64, %s442, %s421
        $region44: #{tpu_custom_call.1} parent=27 // pred_fallthru
          _
        // Predicated region
        $region45: #{tpu_custom_call.1} parent=27 // pred_check
          %p445 = pneg %p162
        $region46: #{tpu_custom_call.1} parent=27 // pred_check_branch
          %447 = sbr.rel (%p445) target = $region48
        $region47: #{tpu_custom_call.1} parent=27 // pred_region
          %449 = vsyncadd %s426, 0
          %s450 = sadd.s32 %s33, %s32
          %s451 = smul.addr %s450, 4
          %s452 = scalar_lea.hbm %s3, %s451
          %s454 = sshll.u32 %s429, 4
          %s455 = int_to_ptr.vmem [resolvable:$true] %s454
          %s456 = sshll.u32 %s452, 4
          %s457 = int_to_ptr.hbm [resolvable:$true] %s456
          %459 = dma.vmem_to_hbm [thread:$0]  %s455, 64, %s457, %s426
        $region48: #{tpu_custom_call.1} parent=27 // pred_fallthru
          _
      $region28: #{tpu_custom_call.1} parent=5 // pred_fallthru
        _
      %p460 = scmp.le.s32.totalorder 2, %s22
      // Predicated region
      $region49: #{tpu_custom_call.1} parent=5 // pred_check
        %p461 = pneg %p460
      $region50: #{tpu_custom_call.1} parent=5 // pred_check_branch
        %463 = sbr.rel (%p461) target = $region52
      $region51: #{tpu_custom_call.1} parent=5 // pred_region
        %s464 = ssub.s32 %s22, 2
        // Predicated region
        $region53: #{tpu_custom_call.1} parent=51 // pred_check
          %p465 = pneg %p140
        $region54: #{tpu_custom_call.1} parent=51 // pred_check_branch
          %467 = sbr.rel (%p465) target = $region56
        $region55: #{tpu_custom_call.1} parent=51 // pred_region
          %s468 = sand.u32 %s125, 1
          %s469 = scalar_lea.sflag [#allocation4], %s468
          %s470 = sand.u32 %s125, 1
          %s471 = smul.addr %s470, 4
          %s472 = scalar_lea.vmem [#allocation7], %s471
          %474 = dma.done %s469, 64
        $region56: #{tpu_custom_call.1} parent=51 // pred_fallthru
          _
        // Predicated region
        $region57: #{tpu_custom_call.1} parent=51 // pred_check
          %p475 = pneg %p168
        $region58: #{tpu_custom_call.1} parent=51 // pred_check_branch
          %477 = sbr.rel (%p475) target = $region60
        $region59: #{tpu_custom_call.1} parent=51 // pred_region
          %s478 = sand.u32 %s153, 1
          %s479 = scalar_lea.sflag [#allocation9], %s478
          %s480 = sand.u32 %s153, 1
          %s481 = smul.addr %s480, 4
          %s482 = scalar_lea.vmem [#allocation8], %s481
          %484 = dma.done %s479, 64
        $region60: #{tpu_custom_call.1} parent=51 // pred_fallthru
          _
      $region52: #{tpu_custom_call.1} parent=5 // pred_fallthru
        _
    $region6: #{tpu_custom_call.1} parent=1 // loop_footer
      %s26 = sadd.s32 1, %s22
    $region7: #{tpu_custom_call.1} parent=1 // loop_footer_branch
      %21 = sbr.rel target = $region3
    $region8: #{tpu_custom_call.1} parent=1 // loop_exit
      _
    %485 = vsyncpa [#allocation3], 1
    %s486 = scalar_lea.sflag [#allocation3], 1
    %487 = vsyncpa %s486, 1
    %488 = vsyncpa [#allocation6], 1
    %s489 = scalar_lea.sflag [#allocation6], 1
    %490 = vsyncpa %s489, 1
    %491 = vsyncpa [#allocation4], 1
    %s492 = scalar_lea.sflag [#allocation4], 1
    %493 = vsyncpa %s492, 1
    %494 = vsyncpa [#allocation9], 1
    %s495 = scalar_lea.sflag [#allocation9], 1
    %496 = vsyncpa %s495, 1

</llo_original>
